<compile_context>
chip_gen: v6e
topology: v6e:2x2x1
jax: 0.10.0
libtpu: 0.0.40
codegen_flags: <defaults>
</compile_context>

<pallas_src>
import jax
import jax.numpy as jnp
from jax.experimental import pallas as pl
from jax.experimental.pallas import tpu as pltpu


# --------------------------------------------------------------------------
# Kernels
# --------------------------------------------------------------------------

def _cmm_packed_kernel(xr_ref, xi_ref, w1_ref, w2_ref, o_ref):
    """Lane-packed complex matvec on the (otherwise idle) MXU.

    xr_ref, xi_ref : (TB, NP) tiles, NP = pack * n_in (pack batch rows / row)
    w1_ref         : (NP, 2*pack) = [ Wr_blockdiag |  Wi_blockdiag]  (resident)
    w2_ref         : (NP, 2*pack) = [-Wi_blockdiag |  Wr_blockdiag]  (resident)
    o_ref          : (TB, 2*pack), cols [0:pack) = real, [pack:2*pack) = imag

    [yr | yi] = xr @ W1 + xi @ W2 — the block-diagonal weights fold the
    complex multiply and the per-n_in-lane segmented reduce into two matmuls,
    giving a single full-block store (no concat / masked column slices).
    """
    xr = xr_ref[...].astype(jnp.float32)
    xi = xi_ref[...].astype(jnp.float32)
    o_ref[...] = (
        jnp.dot(xr, w1_ref[...], preferred_element_type=jnp.float32)
        + jnp.dot(xi, w2_ref[...], preferred_element_type=jnp.float32)
    )


def _cmm_vpu_kernel(xr_ref, xi_ref, w_ref, o_ref):
    """Fallback (no lane packing): VPU multiply + XLU reduce, MXU untouched.

    xr_ref, xi_ref : (TB, N) tiles
    w_ref          : (2, N), row 0 = wr^T, row 1 = wi^T (resident)
    o_ref          : (TB, 2), col 0 = real, col 1 = imag
    """
    xr = xr_ref[...].astype(jnp.float32)
    xi = xi_ref[...].astype(jnp.float32)
    wr = w_ref[0:1, :]
    wi = w_ref[1:2, :]
    o_ref[:, 0:1] = jnp.sum(xr * wr - xi * wi, axis=-1, keepdims=True)
    o_ref[:, 1:2] = jnp.sum(xr * wi + xi * wr, axis=-1, keepdims=True)


# --------------------------------------------------------------------------
# Wrapper
# --------------------------------------------------------------------------

_VMEM_LIMIT_BYTES = 32 * 1024 * 1024       # explicit: safe on v5e/v6e/v7x
_PIPELINE_VMEM_BUDGET = 24 * 1024 * 1024   # double-buffered in+out working set


def _lane_pad_bytes(cols):
    """f32 bytes per row after lane padding to a multiple of 128."""
    return ((cols + 127) // 128) * 128 * 4


def _pick_tile_rows(n_rows, in_row_bytes, out_row_bytes):
    """Largest batch tile (multiple of 8) whose double-buffered footprint fits."""
    per_row = 2 * (2 * in_row_bytes + out_row_bytes)   # 2 in + 1 out, x2 buffers
    tb = max(8, (_PIPELINE_VMEM_BUDGET // per_row) // 8 * 8)
    if n_rows <= tb:
        return n_rows, 1          # single full-extent block (always legal)
    return tb, pl.cdiv(n_rows, tb)  # ragged last block handled by Pallas


def irrep_linreg_forward(xr, xi, wr, wi):
    """IrrepLinreg.forward: (yr, yi) = cmm(xr, xi, wr, wi).

    xr, xi : (B, n_in) real / imaginary activations (f32 or bf16)
    wr, wi : (n_in, 1) real / imaginary weights
    returns yr, yi : (B, 1) float32
    """
    B, N = xr.shape
    assert xi.shape == (B, N)
    assert wr.shape == (N, 1) and wi.shape == (N, 1)

    wr_flat = wr.reshape(-1).astype(jnp.float32)
    wi_flat = wi.reshape(-1).astype(jnp.float32)

    # ---- lane packing: fold `pack` batch rows into the 128-lane axis -------
    pack = 1
    if 0 < N < 128 and 128 % N == 0:
        p = 128 // N
        while p > 1 and B % p != 0:   # degrade gracefully instead of padding
            p //= 2
        pack = p

    if pack > 1:
        NP = N * pack
        Bp = B // pack
        xr_p = xr.reshape(Bp, NP)     # contiguous row-major -> zero-copy reshape
        xi_p = xi.reshape(Bp, NP)

        # Block-diagonal weights: W*_d[l, s] = w[l % N] if l // N == s else 0.
        seg = (jnp.arange(NP)[:, None] // N
               == jnp.arange(pack)[None, :]).astype(jnp.float32)    # (NP, pack)
        wr_d = jnp.tile(wr_flat, pack)[:, None] * seg                # (NP, pack)
        wi_d = jnp.tile(wi_flat, pack)[:, None] * seg                # (NP, pack)
        w1 = jnp.concatenate([wr_d, wi_d], axis=1)                   # (NP, 2p)
        w2 = jnp.concatenate([-wi_d, wr_d], axis=1)                  # (NP, 2p)

        out_cols = 2 * pack
        tb, n_tiles = _pick_tile_rows(
            Bp, _lane_pad_bytes(NP), _lane_pad_bytes(out_cols))

        out = pl.pallas_call(
            _cmm_packed_kernel,
            out_shape=jax.ShapeDtypeStruct((Bp, out_cols), jnp.float32),
            grid_spec=pltpu.PrefetchScalarGridSpec(
                num_scalar_prefetch=0,
                grid=(n_tiles,),
                in_specs=[
                    pl.BlockSpec((tb, NP), lambda i: (i, 0)),
                    pl.BlockSpec((tb, NP), lambda i: (i, 0)),
                    pl.BlockSpec((NP, out_cols), lambda i: (0, 0)),  # resident
                    pl.BlockSpec((NP, out_cols), lambda i: (0, 0)),  # resident
                ],
                out_specs=pl.BlockSpec((tb, out_cols), lambda i: (i, 0)),
            ),
            compiler_params=pltpu.CompilerParams(
                dimension_semantics=("parallel",),
                vmem_limit_bytes=_VMEM_LIMIT_BYTES,
            ),
        )(xr_p, xi_p, w1, w2)

        # Unpack (Bp, 2*pack) -> (B, 1) real / imag (tiny, contiguous reshape).
        yr = out[:, :pack].reshape(B, 1)
        yi = out[:, pack:].reshape(B, 1)
        return yr, yi

    # ---- fallback: no lane packing (N >= 128, 128 % N != 0, or odd B) ------
    w = jnp.stack([wr_flat, wi_flat], axis=0)                        # (2, N)
    tb, n_tiles = _pick_tile_rows(B, _lane_pad_bytes(N), _lane_pad_bytes(2))

    out = pl.pallas_call(
        _cmm_vpu_kernel,
        out_shape=jax.ShapeDtypeStruct((B, 2), jnp.float32),
        grid_spec=pltpu.PrefetchScalarGridSpec(
            num_scalar_prefetch=0,
            grid=(n_tiles,),
            in_specs=[
                pl.BlockSpec((tb, N), lambda i: (i, 0)),
                pl.BlockSpec((tb, N), lambda i: (i, 0)),
                pl.BlockSpec((2, N), lambda i: (0, 0)),              # resident
            ],
            out_specs=pl.BlockSpec((tb, 2), lambda i: (i, 0)),
        ),
        compiler_params=pltpu.CompilerParams(
            dimension_semantics=("parallel",),
            vmem_limit_bytes=_VMEM_LIMIT_BYTES,
        ),
    )(xr, xi, w)

    return out[:, 0:1], out[:, 1:2]


# --------------------------------------------------------------------------
# Params / checks
# --------------------------------------------------------------------------

def init_params(n_in, key):
    """uniform_init convention: U[-0.01, 0.01]; biases unused in forward()."""
    k1, k2 = jax.random.split(key)
    wr = jax.random.uniform(k1, (n_in, 1), jnp.float32, -0.01, 0.01)
    wi = jax.random.uniform(k2, (n_in, 1), jnp.float32, -0.01, 0.01)
    br = jnp.zeros((1,), jnp.float32)  # kept for parity with the module
    bi = jnp.zeros((1,), jnp.float32)
    return wr, wi, br, bi


def _check(B, N, key):
    kxr, kxi, kw = jax.random.split(key, 3)
    xr = jax.random.normal(kxr, (B, N), jnp.float32)
    xi = jax.random.normal(kxi, (B, N), jnp.float32)
    wr, wi, _, _ = init_params(N, kw)

    yr, yi = irrep_linreg_forward(xr, xi, wr, wi)
    jax.block_until_ready((yr, yi))

    # Elementwise f32 reference (avoids XLA matmul-precision ambiguity).
    wr_row = wr.reshape(1, N)
    wi_row = wi.reshape(1, N)
    yr_ref = jnp.sum(xr * wr_row - xi * wi_row, axis=1, keepdims=True)
    yi_ref = jnp.sum(xr * wi_row + xi * wr_row, axis=1, keepdims=True)

    assert yr.shape == (B, 1) and yi.shape == (B, 1)
    assert jnp.allclose(yr, yr_ref, atol=3e-3, rtol=2e-2), ("real", B, N)
    assert jnp.allclose(yi, yi_ref, atol=3e-3, rtol=2e-2), ("imag", B, N)


if __name__ == "__main__":
    key = jax.random.PRNGKey(0)
    k1, k2, k3 = jax.random.split(key, 3)

    # Native module shape: small batch of fourier features (packed path, 1 tile).
    _check(B=8, N=32, key=k1)
    # Multi-tile grid with a ragged last block (no padding anywhere).
    _check(B=32776, N=32, key=k2)
    # Fallback path: n_in that does not divide the 128-lane vreg (VPU kernel).
    _check(B=16, N=160, key=k3)

    # TODO(synk): forward_sparse / cmm_sparse (sparse complex matmul + bias) has
    # no dense-BlockSpec equivalent and is not part of forward().
    print("KERNEL_OK")
</pallas_src>

<mosaic_0001>
module attributes {stable_mosaic.version = 11 : i64} {
  func.func @_cmm_packed_kernel(%arg0: i32, %arg1: memref<2x128xf32, #tpu.memory_space<vmem>>, %arg2: memref<2x128xf32, #tpu.memory_space<vmem>>, %arg3: memref<128x8xf32, #tpu.memory_space<vmem>>, %arg4: memref<128x8xf32, #tpu.memory_space<vmem>>, %arg5: memref<2x8xf32, #tpu.memory_space<vmem>>) attributes {dimension_semantics = [#tpu.dimension_semantics<parallel>], iteration_bounds = array<i64: 1>, scalar_prefetch = 0 : i64, scratch_operands = 0 : i64, tpu.core_type = #tpu.core_type<tc>, window_params = [{transform_indices = @transform_0, window_bounds = array<i64: 2, 128>}, {transform_indices = @transform_1, window_bounds = array<i64: 2, 128>}, {pipeline_mode = #tpu.pipeline_mode<synchronous>, transform_indices = @transform_2, window_bounds = array<i64: 128, 8>}, {pipeline_mode = #tpu.pipeline_mode<synchronous>, transform_indices = @transform_3, window_bounds = array<i64: 128, 8>}, {transform_indices = @transform_4, window_bounds = array<i64: 2, 8>}]} {
    %c0 = arith.constant 0 : index
    %c0_0 = arith.constant 0 : index
    %0 = vector.load %arg1[%c0, %c0_0] : memref<2x128xf32, #tpu.memory_space<vmem>>, vector<2x128xf32>
    %c0_1 = arith.constant 0 : index
    %c0_2 = arith.constant 0 : index
    %1 = vector.load %arg2[%c0_1, %c0_2] : memref<2x128xf32, #tpu.memory_space<vmem>>, vector<2x128xf32>
    %c0_3 = arith.constant 0 : index
    %c0_4 = arith.constant 0 : index
    %2 = vector.load %arg3[%c0_3, %c0_4] : memref<128x8xf32, #tpu.memory_space<vmem>>, vector<128x8xf32>
    %cst = arith.constant dense<0.000000e+00> : vector<2x8xf32>
    %3 = tpu.matmul %0, %2, %cst {dimension_numbers = #tpu.dot_dimension_numbers<[1], [0], [0], [1], [0, 0, 1, 1], [], []>} : vector<2x128xf32>, vector<128x8xf32>, vector<2x8xf32> -> vector<2x8xf32>
    %c0_5 = arith.constant 0 : index
    %c0_6 = arith.constant 0 : index
    %4 = vector.load %arg4[%c0_5, %c0_6] : memref<128x8xf32, #tpu.memory_space<vmem>>, vector<128x8xf32>
    %cst_7 = arith.constant dense<0.000000e+00> : vector<2x8xf32>
    %5 = tpu.matmul %1, %4, %cst_7 {dimension_numbers = #tpu.dot_dimension_numbers<[1], [0], [0], [1], [0, 0, 1, 1], [], []>} : vector<2x128xf32>, vector<128x8xf32>, vector<2x8xf32> -> vector<2x8xf32>
    %6 = arith.addf %3, %5 : vector<2x8xf32>
    %c0_8 = arith.constant 0 : index
    %c0_9 = arith.constant 0 : index
    %7 = vector.load %arg5[%c0_8, %c0_9] : memref<2x8xf32, #tpu.memory_space<vmem>>, vector<2x8xf32>
    tpu.vector_store %arg5[%c0_8, %c0_9], %6 {strides = array<i32>} : memref<2x8xf32, #tpu.memory_space<vmem>>, vector<2x8xf32>,
    return
  }
  func.func @transform_0(%arg0: i32) -> (i32, i32) {
    %c0_i32 = arith.constant 0 : i32
    %c0_i32_0 = arith.constant 0 : i32
    return %arg0, %c0_i32 : i32, i32
  }
  func.func @transform_1(%arg0: i32) -> (i32, i32) {
    %c0_i32 = arith.constant 0 : i32
    %c0_i32_0 = arith.constant 0 : i32
    return %arg0, %c0_i32 : i32, i32
  }
  func.func @transform_2(%arg0: i32) -> (i32, i32) {
    %c0_i32 = arith.constant 0 : i32
    %c0_i32_0 = arith.constant 0 : i32
    %c0_i32_1 = arith.constant 0 : i32
    return %c0_i32, %c0_i32_0 : i32, i32
  }
  func.func @transform_3(%arg0: i32) -> (i32, i32) {
    %c0_i32 = arith.constant 0 : i32
    %c0_i32_0 = arith.constant 0 : i32
    %c0_i32_1 = arith.constant 0 : i32
    return %c0_i32, %c0_i32_0 : i32, i32
  }
  func.func @transform_4(%arg0: i32) -> (i32, i32) {
    %c0_i32 = arith.constant 0 : i32
    %c0_i32_0 = arith.constant 0 : i32
    return %arg0, %c0_i32 : i32, i32
  }
}

</mosaic_0001>

<llo_original>
// kernel: tpu_custom_call.1
$region0: #{tpu_custom_call.1}
  #allocation0 [shape = 'u32[]', space=smem, size = 0x4, offset = 0x4, fixed_abs, tag = 'smem constant byte address 0x4 - core index']
  #allocation1 [shape = 'u32[144,128]{1,0:T(1,128)}', space=vmem, size = 0x12000, scoped, tag = 'internal scratch']
  %s0 = inlined_call_operand.vmem [shape: f32[2,128], index: 0, kind: input, shape index: {}]
  %s1 = inlined_call_operand.vmem [shape: f32[2,128], index: 1, kind: input, shape index: {}]
  %s2 = inlined_call_operand.vmem [shape: f32[128,8], index: 2, kind: input, shape index: {}]
  %s3 = inlined_call_operand.vmem [shape: f32[128,8], index: 3, kind: input, shape index: {}]
  %s4 = inlined_call_operand.hbm [shape: f32[2,8], index: 4, kind: output, shape index: {}]
  %s5 = sld [smem:[#allocation0]]
  $region26: #{tpu_custom_call.1} parent=0
    _
  %s7 = ssub.s32 1, %s5
  %s8 = scalar_select 0, %s7, %s5
  $region1: #{tpu_custom_call.1} parent=0
    #allocation2 [shape = 'u8[1024]{0}', space=vmem, size = 0x400, scoped, tag = 'output window, operand 0, single buffered']
    #allocation3 [shape = 's32[1]{0}', space=sflag, size = 0x4, scoped, tag = 'scoped memory for tpu_custom_call.1']
    %9 = vsyncpa [#allocation3], 0
    // Predicated region
    $region2: #{tpu_custom_call.1} parent=1 // pred_check
      _
    $region3: #{tpu_custom_call.1} parent=1 // pred_check_branch
      %11 = sbr.rel (0) target = $region5
    $region4: #{tpu_custom_call.1} parent=1 // pred_region
      _
    $region5: #{tpu_custom_call.1} parent=1 // pred_fallthru
      _
    // Predicated region
    $region6: #{tpu_custom_call.1} parent=1 // pred_check
      _
    $region7: #{tpu_custom_call.1} parent=1 // pred_check_branch
      %13 = sbr.rel (0) target = $region9
    $region8: #{tpu_custom_call.1} parent=1 // pred_region
      _
    $region9: #{tpu_custom_call.1} parent=1 // pred_fallthru
      _
    // Predicated region
    $region10: #{tpu_custom_call.1} parent=1 // pred_check
      _
    $region11: #{tpu_custom_call.1} parent=1 // pred_check_branch
      %15 = sbr.rel (0) target = $region13
    $region12: #{tpu_custom_call.1} parent=1 // pred_region
      _
    $region13: #{tpu_custom_call.1} parent=1 // pred_fallthru
      _
    // Predicated region
    $region14: #{tpu_custom_call.1} parent=1 // pred_check
      _
    $region15: #{tpu_custom_call.1} parent=1 // pred_check_branch
      %17 = sbr.rel (0) target = $region17
    $region16: #{tpu_custom_call.1} parent=1 // pred_region
      _
    $region17: #{tpu_custom_call.1} parent=1 // pred_fallthru
      _
    %v18 = vld [vmem:[%s0] sm:$0x3]
    %v19 = vld [vmem:[%s1] sm:$0x3]
    %v20 = vld [vmem:[%s2] sm:$0xff]
    %v21 = vld [vmem:[%s2 + $0x8] sm:$0xff]
    %v22 = vld [vmem:[%s2 + $0x10] sm:$0xff]
    %v23 = vld [vmem:[%s2 + $0x18] sm:$0xff]
    %v24 = vld [vmem:[%s2 + $0x20] sm:$0xff]
    %v25 = vld [vmem:[%s2 + $0x28] sm:$0xff]
    %v26 = vld [vmem:[%s2 + $0x30] sm:$0xff]
    %v27 = vld [vmem:[%s2 + $0x38] sm:$0xff]
    %v28 = vld [vmem:[%s2 + $0x40] sm:$0xff]
    %v29 = vld [vmem:[%s2 + $0x48] sm:$0xff]
    %v30 = vld [vmem:[%s2 + $0x50] sm:$0xff]
    %v31 = vld [vmem:[%s2 + $0x58] sm:$0xff]
    %v32 = vld [vmem:[%s2 + $0x60] sm:$0xff]
    %v33 = vld [vmem:[%s2 + $0x68] sm:$0xff]
    %v34 = vld [vmem:[%s2 + $0x70] sm:$0xff]
    %v35 = vld [vmem:[%s2 + $0x78] sm:$0xff]
    %v36 = vld [vmem:[%s3] sm:$0xff]
    %v37 = vld [vmem:[%s3 + $0x8] sm:$0xff]
    %v38 = vld [vmem:[%s3 + $0x10] sm:$0xff]
    %v39 = vld [vmem:[%s3 + $0x18] sm:$0xff]
    %v40 = vld [vmem:[%s3 + $0x20] sm:$0xff]
    %v41 = vld [vmem:[%s3 + $0x28] sm:$0xff]
    %v42 = vld [vmem:[%s3 + $0x30] sm:$0xff]
    %v43 = vld [vmem:[%s3 + $0x38] sm:$0xff]
    %v44 = vld [vmem:[%s3 + $0x40] sm:$0xff]
    %v45 = vld [vmem:[%s3 + $0x48] sm:$0xff]
    %v46 = vld [vmem:[%s3 + $0x50] sm:$0xff]
    %v47 = vld [vmem:[%s3 + $0x58] sm:$0xff]
    %v48 = vld [vmem:[%s3 + $0x60] sm:$0xff]
    %v49 = vld [vmem:[%s3 + $0x68] sm:$0xff]
    %v50 = vld [vmem:[%s3 + $0x70] sm:$0xff]
    %v51 = vld [vmem:[%s3 + $0x78] sm:$0xff]
    %52 = vmatprep.subr.mxu0 0.0
    %53 = vmatpush1.msra.mxu0 %v51
    %54 = vmatprep.subr.mxu0 0.0
    %55 = vmatpush1.msra.mxu0 %v50
    %56 = vmatprep.subr.mxu0 0.0
    %57 = vmatpush1.msra.mxu0 %v49
    %58 = vmatprep.subr.mxu0 0.0
    %59 = vmatpush1.msra.mxu0 %v48
    %60 = vmatprep.subr.mxu0 0.0
    %61 = vmatpush1.msra.mxu0 %v47
    %62 = vmatprep.subr.mxu0 0.0
    %63 = vmatpush1.msra.mxu0 %v46
    %64 = vmatprep.subr.mxu0 0.0
    %65 = vmatpush1.msra.mxu0 %v45
    %66 = vmatprep.subr.mxu0 0.0
    %67 = vmatpush1.msra.mxu0 %v44
    %68 = vmatprep.subr.mxu0 0.0
    %69 = vmatpush1.msra.mxu0 %v43
    %70 = vmatprep.subr.mxu0 0.0
    %71 = vmatpush1.msra.mxu0 %v42
    %72 = vmatprep.subr.mxu0 0.0
    %73 = vmatpush1.msra.mxu0 %v41
    %74 = vmatprep.subr.mxu0 0.0
    %75 = vmatpush1.msra.mxu0 %v40
    %76 = vmatprep.subr.mxu0 0.0
    %77 = vmatpush1.msra.mxu0 %v39
    %78 = vmatprep.subr.mxu0 0.0
    %79 = vmatpush1.msra.mxu0 %v38
    %80 = vmatprep.subr.mxu0 0.0
    %81 = vmatpush1.msra.mxu0 %v37
    %82 = vmatprep.subr.mxu0 0.0
    %83 = vmatpush1.msra.mxu0 %v36
    %84 = vmatprep.subr.mxu0 0.0
    %85 = vmatpush2.msra.mxu0 0.0
    %86 = vmatprep.subr.mxu0 0.0
    %87 = vmatpush2.msra.mxu0 0.0
    %88 = vmatprep.subr.mxu0 0.0
    %89 = vmatpush2.msra.mxu0 0.0
    %90 = vmatprep.subr.mxu0 0.0
    %91 = vmatpush2.msra.mxu0 0.0
    %92 = vmatprep.subr.mxu0 0.0
    %93 = vmatpush2.msra.mxu0 0.0
    %94 = vmatprep.subr.mxu0 0.0
    %95 = vmatpush2.msra.mxu0 0.0
    %96 = vmatprep.subr.mxu0 0.0
    %97 = vmatpush2.msra.mxu0 0.0
    %98 = vmatprep.subr.mxu0 0.0
    %99 = vmatpush2.msra.mxu0 0.0
    %100 = vmatprep.subr.mxu0 0.0
    %101 = vmatpush2.msra.mxu0 0.0
    %102 = vmatprep.subr.mxu0 0.0
    %103 = vmatpush2.msra.mxu0 0.0
    %104 = vmatprep.subr.mxu0 0.0
    %105 = vmatpush2.msra.mxu0 0.0
    %106 = vmatprep.subr.mxu0 0.0
    %107 = vmatpush2.msra.mxu0 0.0
    %108 = vmatprep.subr.mxu0 0.0
    %109 = vmatpush2.msra.mxu0 0.0
    %110 = vmatprep.subr.mxu0 0.0
    %111 = vmatpush2.msra.mxu0 0.0
    %112 = vmatprep.subr.mxu0 0.0
    %113 = vmatpush2.msra.mxu0 0.0
    %114 = vmatprep.subr.mxu0 0.0
    %115 = vmatpush2.msra.mxu0 0.0
    %116 = vmatprep.mubr.f32.mxu0 0.0
    %117 = vmatmul.mubr.f32.gmra.mxu0 %v19
    %v118 = vpop.f32.mrf.mxu0
    %v119 = vadd.f32 0.0, %v118
    %v120 = vpop.f32.mrf.mxu0
    %121 = vdwg.mxu0
    %122 = vmatprep.subr.mxu0 0.0
    %123 = vmatpush1.msra.mxu0 %v35
    %124 = vmatprep.subr.mxu0 0.0
    %125 = vmatpush1.msra.mxu0 %v34
    %126 = vmatprep.subr.mxu0 0.0
    %127 = vmatpush1.msra.mxu0 %v33
    %128 = vmatprep.subr.mxu0 0.0
    %129 = vmatpush1.msra.mxu0 %v32
    %130 = vmatprep.subr.mxu0 0.0
    %131 = vmatpush1.msra.mxu0 %v31
    %132 = vmatprep.subr.mxu0 0.0
    %133 = vmatpush1.msra.mxu0 %v30
    %134 = vmatprep.subr.mxu0 0.0
    %135 = vmatpush1.msra.mxu0 %v29
    %136 = vmatprep.subr.mxu0 0.0
    %137 = vmatpush1.msra.mxu0 %v28
    %138 = vmatprep.subr.mxu0 0.0
    %139 = vmatpush1.msra.mxu0 %v27
    %140 = vmatprep.subr.mxu0 0.0
    %141 = vmatpush1.msra.mxu0 %v26
    %142 = vmatprep.subr.mxu0 0.0
    %143 = vmatpush1.msra.mxu0 %v25
    %144 = vmatprep.subr.mxu0 0.0
    %145 = vmatpush1.msra.mxu0 %v24
    %146 = vmatprep.subr.mxu0 0.0
    %147 = vmatpush1.msra.mxu0 %v23
    %148 = vmatprep.subr.mxu0 0.0
    %149 = vmatpush1.msra.mxu0 %v22
    %150 = vmatprep.subr.mxu0 0.0
    %151 = vmatpush1.msra.mxu0 %v21
    %152 = vmatprep.subr.mxu0 0.0
    %153 = vmatpush1.msra.mxu0 %v20
    %154 = vmatprep.subr.mxu0 0.0
    %155 = vmatpush2.msra.mxu0 0.0
    %156 = vmatprep.subr.mxu0 0.0
    %157 = vmatpush2.msra.mxu0 0.0
    %158 = vmatprep.subr.mxu0 0.0
    %159 = vmatpush2.msra.mxu0 0.0
    %160 = vmatprep.subr.mxu0 0.0
    %161 = vmatpush2.msra.mxu0 0.0
    %162 = vmatprep.subr.mxu0 0.0
    %163 = vmatpush2.msra.mxu0 0.0
    %164 = vmatprep.subr.mxu0 0.0
    %165 = vmatpush2.msra.mxu0 0.0
    %166 = vmatprep.subr.mxu0 0.0
    %167 = vmatpush2.msra.mxu0 0.0
    %168 = vmatprep.subr.mxu0 0.0
    %169 = vmatpush2.msra.mxu0 0.0
    %170 = vmatprep.subr.mxu0 0.0
    %171 = vmatpush2.msra.mxu0 0.0
    %172 = vmatprep.subr.mxu0 0.0
    %173 = vmatpush2.msra.mxu0 0.0
    %174 = vmatprep.subr.mxu0 0.0
    %175 = vmatpush2.msra.mxu0 0.0
    %176 = vmatprep.subr.mxu0 0.0
    %177 = vmatpush2.msra.mxu0 0.0
    %178 = vmatprep.subr.mxu0 0.0
    %179 = vmatpush2.msra.mxu0 0.0
    %180 = vmatprep.subr.mxu0 0.0
    %181 = vmatpush2.msra.mxu0 0.0
    %182 = vmatprep.subr.mxu0 0.0
    %183 = vmatpush2.msra.mxu0 0.0
    %184 = vmatprep.subr.mxu0 0.0
    %185 = vmatpush2.msra.mxu0 0.0
    %186 = vmatprep.mubr.f32.mxu0 0.0
    %187 = vmatmul.mubr.f32.gmra.mxu0 %v18
    %v188 = vpop.f32.mrf.mxu0
    %v189 = vadd.f32 %v119, %v188
    %v190 = vpop.f32.mrf.mxu0
    %191 = vdwg.mxu0
    %vm192 = vcmask 58368
    %193 = vst.msk [vmem:[#allocation2] sm:$0x3] %vm192, %v189
    // Predicated region
    $region18: #{tpu_custom_call.1} parent=1 // pred_check
      _
    $region19: #{tpu_custom_call.1} parent=1 // pred_check_branch
      %195 = sbr.rel (0) target = $region21
    $region20: #{tpu_custom_call.1} parent=1 // pred_region
      %s197 = ssub.s32 32, 32
      %198 = vsyncadd [#allocation3], %s197
      %s200 = sshll.u32 [#allocation2], 4
      %s201 = int_to_ptr.vmem [resolvable:$true] %s200
      %203 = dma.vmem_to_hbm [thread:$0]  %s201, 32, %s4, [#allocation3]
    $region21: #{tpu_custom_call.1} parent=1 // pred_fallthru
      _
    // Predicated region
    $region22: #{tpu_custom_call.1} parent=1 // pred_check
      _
    $region23: #{tpu_custom_call.1} parent=1 // pred_check_branch
      %205 = sbr.rel (0) target = $region25
    $region24: #{tpu_custom_call.1} parent=1 // pred_region
      %206 = dma.done [#allocation3], 32
    $region25: #{tpu_custom_call.1} parent=1 // pred_fallthru
      _
    %207 = vsyncpa [#allocation3], 1

</llo_original>
